<compile_context>
chip_gen: v5e
topology: v5e:2x2
jax: 0.10.0
libtpu: 0.0.40
codegen_flags: <defaults>
</compile_context>

<pallas_src>
import functools
import math

import jax
import jax.numpy as jnp
from jax.experimental import pallas as pl
from jax.experimental.pallas import tpu as pltpu


# ----------------------------------------------------------------------------
# Kernel
# ----------------------------------------------------------------------------
def _bce_partial_kernel(logit_ref, target_ref, mask_ref, out_ref, *,
                        label_smoothing, lane_groups):
    """Accumulates masked BCE-with-logits partial sums directly into the
    VMEM-resident (1, 1, tile_b, 128) output block (P3 accumulator)."""
    bi = pl.program_id(2)
    j = pl.program_id(3)

    @pl.when(jnp.logical_and(bi == 0, j == 0))
    def _():
        out_ref[...] = jnp.zeros_like(out_ref)

    s = label_smoothing
    acc = out_ref[0, 0]                                  # (tile_b, 128) f32
    # Per-128-lane-group streaming: slice straight from the refs, compute the
    # masked loss on a (tile_b, 128) vreg-aligned slice, accumulate.  Pure
    # VPU/EUP work; no full-tile temporaries, no XLU, no scalar RMW.
    for c in range(lane_groups):
        lo, hi = c * 128, (c + 1) * 128
        x = logit_ref[0, :, lo:hi].astype(jnp.float32)
        y = target_ref[0, :, lo:hi].astype(jnp.float32)
        m = mask_ref[0, :, lo:hi].astype(jnp.float32)
        y = y * (1.0 - s) + 0.5 * s                      # label smoothing
        # numerically stable BCE with logits: max(x,0) - x*y + log1p(exp(-|x|))
        loss = jnp.maximum(x, 0.0) - x * y + jnp.log1p(jnp.exp(-jnp.abs(x)))
        acc = acc + loss * m
    out_ref[0, 0] = acc


# ----------------------------------------------------------------------------
# Shape / tiling helpers
# ----------------------------------------------------------------------------
def _sublane_align(dtype):
    """Row (sublane) alignment required by the dtype's packing."""
    return {4: 8, 2: 16, 1: 32}.get(jnp.dtype(dtype).itemsize, 8)


def _vmem_capacity_bytes():
    try:
        return int(pltpu.get_tpu_info().vmem_capacity_bytes)
    except Exception:
        return 64 * 1024 * 1024  # conservative (v7x-sized) default


def _flat_2d_shape(shape):
    if len(shape) == 0:
        return 1, 1
    if len(shape) == 1:
        return 1, int(shape[0])
    return int(math.prod(shape[:-1])), int(shape[-1])


def _slab_shape(R, C, row_align, max_lanes=2048):
    """If the padded last dim is narrow, fold rows into lanes (free row-major
    reshape) so tiles stay lane-dense and the grid stays short."""
    total = R * C
    if C >= 512:
        return (R, C)
    for L in (2048, 1024, 512, 256):
        if L > C and L <= max_lanes and total % L == 0 and (total // L) % row_align == 0:
            return (total // L, L)
    return (R, C)


def _prep_2d(x, row_align, slab):
    """Flatten to 2D, pad only if misaligned (masks pad with 0 so sums stay
    exact), then (freely) reshape to the group's lane-dense slab."""
    if x.ndim == 0:
        x = x.reshape(1, 1)
    elif x.ndim == 1:
        x = x.reshape(1, -1)
    else:
        x = x.reshape(-1, x.shape[-1])
    r, c = x.shape
    pr = (-r) % row_align
    pc = (-c) % 128
    if pr or pc:
        x = jnp.pad(x, ((0, pr), (0, pc)))
    if x.shape != slab:
        x = x.reshape(slab)
    return x


def _pick_tiles(R, C, row_align, itemsize, max_block_bytes, max_lanes=2048):
    """Largest lane-dense tile that divides the slab and fits the block budget."""
    tile_d = 128
    for lanes in range(128, min(C, max_lanes) + 1, 128):
        if C % lanes == 0:
            tile_d = lanes
    tile_b = row_align
    for rows in range(row_align, R + 1, row_align):
        if R % rows == 0 and rows * tile_d * itemsize <= max_block_bytes:
            tile_b = rows
    return tile_b, tile_d


# ----------------------------------------------------------------------------
# Fused per-group kernel launch
# ----------------------------------------------------------------------------
def fused_masked_bce_sums(logits, targets, masks, *, label_smoothing,
                          max_block_bytes, vmem_capacity):
    """logits/targets/masks: (T, R, C) slabs (R row-aligned, C % 128 == 0).

    Returns (T,) float32: sum(BCEWithLogits(logit, smooth(target)) * mask)
    per task (no division -- caller divides by the true, unpadded numel).
    """
    T, R, C = logits.shape
    itemsize = max(jnp.dtype(a.dtype).itemsize for a in (logits, targets, masks))
    row_align = max(_sublane_align(a.dtype) for a in (logits, targets, masks))

    tile_b, tile_d = _pick_tiles(R, C, row_align, itemsize, max_block_bytes)
    nb, nd = R // tile_b, C // tile_d
    # Extra "parallel" split so both v7x TensorCores get work even when a
    # shape-group has a single task; harmless (near-zero) on v5e/v6e.
    S = 2 if (nb % 2 == 0 and nb >= 2) else 1
    nbs = nb // S
    lane_groups = tile_d // 128

    kernel = functools.partial(
        _bce_partial_kernel,
        label_smoothing=float(label_smoothing),
        lane_groups=lane_groups,
    )

    in_spec = pl.BlockSpec((1, tile_b, tile_d),
                           lambda t, s, bi, j: (t, s * nbs + bi, j))
    out_spec = pl.BlockSpec((1, 1, tile_b, 128),
                            lambda t, s, bi, j: (t, s, 0, 0))

    # VMEM budget from the actual footprint: 3 inputs x 2 pipeline buffers
    # + 2 output buffers + headroom; clamped below physical capacity.
    in_block_bytes = tile_b * tile_d * itemsize
    out_block_bytes = tile_b * 128 * 4
    footprint = 3 * 2 * in_block_bytes + 2 * out_block_bytes
    vmem_limit = max(32 << 20, footprint + (8 << 20))
    vmem_limit = min(vmem_limit, max(32 << 20, vmem_capacity - (16 << 20)))

    partial = pl.pallas_call(
        kernel,
        out_shape=jax.ShapeDtypeStruct((T, S, tile_b, 128), jnp.float32),
        grid_spec=pltpu.PrefetchScalarGridSpec(
            num_scalar_prefetch=0,
            grid=(T, S, nbs, nd),
            in_specs=[in_spec, in_spec, in_spec],
            out_specs=out_spec,
        ),
        compiler_params=pltpu.CompilerParams(
            dimension_semantics=("parallel", "parallel", "arbitrary", "arbitrary"),
            vmem_limit_bytes=int(vmem_limit),
        ),
    )(logits, targets, masks)

    # Tiny final reduction over the per-(task, split) partial-sum tiles.
    return partial.sum(axis=(1, 2, 3))


# ----------------------------------------------------------------------------
# Module
# ----------------------------------------------------------------------------
class BCELossPallas:
    """JAX/Pallas port of the PyTorch BCELoss module (forward pass).

    Like the PyTorch reference, expects raw logits (applies
    binary_cross_entropy_with_logits) and the masked mean divides by the
    total element count (numel), not by mask.sum().
    """

    def __init__(self, task_names, label_smoothing, loss_autoweighting):
        self.task_names = list(task_names)
        self.label_smoothing = float(label_smoothing)
        self.loss_autoweighting = bool(loss_autoweighting)
        # TODO(synk): loss_weights is a trainable Parameter in PyTorch; only the
        # forward computation is ported here.
        self.loss_weights = jnp.ones((len(self.task_names),), dtype=jnp.float32)
        self.training = True  # mirror nn.Module default train() mode

    def __call__(self, outputs, targets):
        losses = {}

        # Group tasks with identical (shape, dtypes) so each group is ONE
        # fused kernel launch; dtypes in the key prevent stack-time promotion.
        groups = {}
        for i, label in enumerate(self.task_names):
            key = (tuple(outputs[label].shape),
                   jnp.dtype(outputs[label].dtype),
                   jnp.dtype(targets[label].dtype),
                   jnp.dtype(targets[f"{label}_mask"].dtype))
            groups.setdefault(key, []).append((i, label))

        vmem_capacity = _vmem_capacity_bytes()
        # Bigger blocks on 128 MiB-VMEM parts (v5e/v6e); 4 MiB on v7x (64 MiB).
        max_block_bytes = (8 << 20) if vmem_capacity >= (100 << 20) else (4 << 20)

        for (shape, ldt, tdt, mdt), items in groups.items():
            numel = float(math.prod(shape)) if shape else 1.0
            row_align = max(_sublane_align(ldt), _sublane_align(tdt),
                            _sublane_align(mdt))
            r, c = _flat_2d_shape(shape)
            R, C = r + (-r) % row_align, c + (-c) % 128
            slab = _slab_shape(R, C, row_align)

            logit_l = [_prep_2d(outputs[lab], row_align, slab) for _, lab in items]
            target_l = [_prep_2d(targets[lab], row_align, slab) for _, lab in items]
            mask_l = [_prep_2d(targets[f"{lab}_mask"], row_align, slab)
                      for _, lab in items]
            if len(items) == 1:
                logit_s, target_s, mask_s = (logit_l[0][None], target_l[0][None],
                                             mask_l[0][None])
            else:
                logit_s = jnp.stack(logit_l, axis=0)
                target_s = jnp.stack(target_l, axis=0)
                mask_s = jnp.stack(mask_l, axis=0)

            sums = fused_masked_bce_sums(
                logit_s, target_s, mask_s,
                label_smoothing=self.label_smoothing,
                max_block_bytes=max_block_bytes,
                vmem_capacity=vmem_capacity)

            for k, (i, label) in enumerate(items):
                loss = sums[k] / jnp.float32(numel)
                if self.training and self.loss_autoweighting:
                    w = self.loss_weights[i]
                    loss = loss * 0.5 / (w ** 2) + jnp.log(1.0 + w ** 2)
                losses[label] = loss
        return losses


# ----------------------------------------------------------------------------
# Pure-JAX reference (for the silent correctness check)
# ----------------------------------------------------------------------------
def _reference_loss(logit, target, mask, label_smoothing):
    x = logit.astype(jnp.float32)
    y = target.astype(jnp.float32) * (1.0 - label_smoothing) + 0.5 * label_smoothing
    m = mask.astype(jnp.float32)
    loss = jnp.maximum(x, 0.0) - x * y + jnp.log1p(jnp.exp(-jnp.abs(x)))
    return jnp.mean(loss * m)


if __name__ == "__main__":
    task_names = ["task_a", "task_b", "task_c"]
    label_smoothing = 0.1
    loss_autoweighting = True

    # task_a / task_b share an aligned shape (fused, no padding);
    # task_c exercises the misaligned-shape padding path.
    shapes = {"task_a": (8, 256), "task_b": (8, 256), "task_c": (4, 100)}

    key = jax.random.PRNGKey(0)
    outputs, targets = {}, {}
    for label in task_names:
        shp = shapes[label]
        key, k1, k2, k3 = jax.random.split(key, 4)
        outputs[label] = jax.random.normal(k1, shp, dtype=jnp.float32)
        targets[label] = (jax.random.uniform(k2, shp) > 0.5).astype(jnp.float32)
        targets[f"{label}_mask"] = (
            jax.random.uniform(k3, shp) > 0.2
        ).astype(jnp.float32)

    module = BCELossPallas(task_names, label_smoothing, loss_autoweighting)
    losses = module(outputs, targets)
    losses = jax.tree_util.tree_map(jax.block_until_ready, losses)

    # silent correctness check against a pure-JAX reference
    for i, label in enumerate(task_names):
        base = _reference_loss(
            outputs[label], targets[label], targets[f"{label}_mask"], label_smoothing
        )
        w = module.loss_weights[i]
        ref = base * 0.5 / (w ** 2) + jnp.log(1.0 + w ** 2)
        assert jnp.allclose(losses[label], ref, rtol=1e-5, atol=1e-5), (
            label, float(losses[label]), float(ref))

    print("KERNEL_OK")
</pallas_src>

<mosaic_0001>
module attributes {stable_mosaic.version = 11 : i64} {
  func.func @_bce_partial_kernel(%arg0: i32, %arg1: i32, %arg2: i32, %arg3: i32, %arg4: memref<1x8x256xf32, #tpu.memory_space<vmem>>, %arg5: memref<1x8x256xf32, #tpu.memory_space<vmem>>, %arg6: memref<1x8x256xf32, #tpu.memory_space<vmem>>, %arg7: memref<1x1x8x128xf32, #tpu.memory_space<vmem>>) attributes {dimension_semantics = [#tpu.dimension_semantics<parallel>, #tpu.dimension_semantics<parallel>, #tpu.dimension_semantics<arbitrary>, #tpu.dimension_semantics<arbitrary>], iteration_bounds = array<i64: 2, 1, 1, 1>, scalar_prefetch = 0 : i64, scratch_operands = 0 : i64, tpu.core_type = #tpu.core_type<tc>, window_params = [{transform_indices = @transform_0, window_bounds = array<i64: 1, 8, 256>}, {transform_indices = @transform_1, window_bounds = array<i64: 1, 8, 256>}, {transform_indices = @transform_2, window_bounds = array<i64: 1, 8, 256>}, {transform_indices = @transform_3, window_bounds = array<i64: 1, 1, 8, 128>}]} {
    %c0_i32 = arith.constant 0 : i32
    %0 = arith.cmpi eq, %arg2, %c0_i32 : i32
    %c0_i32_0 = arith.constant 0 : i32
    %1 = arith.cmpi eq, %arg3, %c0_i32_0 : i32
    %2 = arith.andi %0, %1 : i1
    %3 = arith.extui %2 : i1 to i32
    %c0_i32_1 = arith.constant 0 : i32
    %4 = arith.cmpi ne, %3, %c0_i32_1 : i32
    scf.if %4 {
      %cst_33 = arith.constant 0.000000e+00 : f32
      %54 = vector.broadcast %cst_33 : f32 to vector<1x1x8x128xf32>
      %c0_34 = arith.constant 0 : index
      %c0_35 = arith.constant 0 : index
      %c0_36 = arith.constant 0 : index
      %c0_37 = arith.constant 0 : index
      %55 = vector.load %arg7[%c0_34, %c0_35, %c0_36, %c0_37] : memref<1x1x8x128xf32, #tpu.memory_space<vmem>>, vector<1x1x8x128xf32>
      tpu.vector_store %arg7[%c0_34, %c0_35, %c0_36, %c0_37], %54 {strides = array<i32>} : memref<1x1x8x128xf32, #tpu.memory_space<vmem>>, vector<1x1x8x128xf32>,
    } else {
    }
    %c0 = arith.constant 0 : index
    %c0_2 = arith.constant 0 : index
    %c0_3 = arith.constant 0 : index
    %c0_4 = arith.constant 0 : index
    %5 = vector.load %arg7[%c0, %c0_2, %c0_3, %c0_4] : memref<1x1x8x128xf32, #tpu.memory_space<vmem>>, vector<1x1x8x128xf32>
    %6 = vector.shape_cast %5 : vector<1x1x8x128xf32> to vector<8x128xf32>
    %c0_5 = arith.constant 0 : index
    %c0_6 = arith.constant 0 : index
    %c0_7 = arith.constant 0 : index
    %7 = vector.load %arg4[%c0_5, %c0_6, %c0_7] : memref<1x8x256xf32, #tpu.memory_space<vmem>>, vector<1x8x128xf32>
    %8 = vector.shape_cast %7 : vector<1x8x128xf32> to vector<8x128xf32>
    %c0_8 = arith.constant 0 : index
    %c0_9 = arith.constant 0 : index
    %c0_10 = arith.constant 0 : index
    %9 = vector.load %arg5[%c0_8, %c0_9, %c0_10] : memref<1x8x256xf32, #tpu.memory_space<vmem>>, vector<1x8x128xf32>
    %10 = vector.shape_cast %9 : vector<1x8x128xf32> to vector<8x128xf32>
    %c0_11 = arith.constant 0 : index
    %c0_12 = arith.constant 0 : index
    %c0_13 = arith.constant 0 : index
    %11 = vector.load %arg6[%c0_11, %c0_12, %c0_13] : memref<1x8x256xf32, #tpu.memory_space<vmem>>, vector<1x8x128xf32>
    %12 = vector.shape_cast %11 : vector<1x8x128xf32> to vector<8x128xf32>
    %cst = arith.constant 0.899999976 : f32
    %13 = vector.broadcast %cst : f32 to vector<8x128xf32>
    %14 = arith.mulf %10, %13 : vector<8x128xf32>
    %cst_14 = arith.constant 5.000000e-02 : f32
    %15 = vector.broadcast %cst_14 : f32 to vector<8x128xf32>
    %16 = arith.addf %14, %15 : vector<8x128xf32>
    %cst_15 = arith.constant 0.000000e+00 : f32
    %17 = vector.broadcast %cst_15 : f32 to vector<8x128xf32>
    %18 = arith.maximumf %8, %17 : vector<8x128xf32>
    %19 = arith.mulf %8, %16 : vector<8x128xf32>
    %20 = arith.subf %18, %19 : vector<8x128xf32>
    %21 = math.absf %8 : vector<8x128xf32>
    %cst_16 = arith.constant 0.000000e+00 : f32
    %22 = vector.broadcast %cst_16 : f32 to vector<8x128xf32>
    %23 = arith.subf %22, %21 : vector<8x128xf32>
    %24 = math.exp %23 : vector<8x128xf32>
    %25 = math.log1p %24 : vector<8x128xf32>
    %26 = arith.addf %20, %25 : vector<8x128xf32>
    %27 = arith.mulf %26, %12 : vector<8x128xf32>
    %28 = arith.addf %6, %27 : vector<8x128xf32>
    %c0_17 = arith.constant 0 : index
    %c0_18 = arith.constant 0 : index
    %c128 = arith.constant 128 : index
    %29 = vector.load %arg4[%c0_17, %c0_18, %c128] : memref<1x8x256xf32, #tpu.memory_space<vmem>>, vector<1x8x128xf32>
    %30 = vector.shape_cast %29 : vector<1x8x128xf32> to vector<8x128xf32>
    %c0_19 = arith.constant 0 : index
    %c0_20 = arith.constant 0 : index
    %c128_21 = arith.constant 128 : index
    %31 = vector.load %arg5[%c0_19, %c0_20, %c128_21] : memref<1x8x256xf32, #tpu.memory_space<vmem>>, vector<1x8x128xf32>
    %32 = vector.shape_cast %31 : vector<1x8x128xf32> to vector<8x128xf32>
    %c0_22 = arith.constant 0 : index
    %c0_23 = arith.constant 0 : index
    %c128_24 = arith.constant 128 : index
    %33 = vector.load %arg6[%c0_22, %c0_23, %c128_24] : memref<1x8x256xf32, #tpu.memory_space<vmem>>, vector<1x8x128xf32>
    %34 = vector.shape_cast %33 : vector<1x8x128xf32> to vector<8x128xf32>
    %cst_25 = arith.constant 0.899999976 : f32
    %35 = vector.broadcast %cst_25 : f32 to vector<8x128xf32>
    %36 = arith.mulf %32, %35 : vector<8x128xf32>
    %cst_26 = arith.constant 5.000000e-02 : f32
    %37 = vector.broadcast %cst_26 : f32 to vector<8x128xf32>
    %38 = arith.addf %36, %37 : vector<8x128xf32>
    %cst_27 = arith.constant 0.000000e+00 : f32
    %39 = vector.broadcast %cst_27 : f32 to vector<8x128xf32>
    %40 = arith.maximumf %30, %39 : vector<8x128xf32>
    %41 = arith.mulf %30, %38 : vector<8x128xf32>
    %42 = arith.subf %40, %41 : vector<8x128xf32>
    %43 = math.absf %30 : vector<8x128xf32>
    %cst_28 = arith.constant 0.000000e+00 : f32
    %44 = vector.broadcast %cst_28 : f32 to vector<8x128xf32>
    %45 = arith.subf %44, %43 : vector<8x128xf32>
    %46 = math.exp %45 : vector<8x128xf32>
    %47 = math.log1p %46 : vector<8x128xf32>
    %48 = arith.addf %42, %47 : vector<8x128xf32>
    %49 = arith.mulf %48, %34 : vector<8x128xf32>
    %50 = arith.addf %28, %49 : vector<8x128xf32>
    %c0_29 = arith.constant 0 : index
    %c0_30 = arith.constant 0 : index
    %c0_31 = arith.constant 0 : index
    %c0_32 = arith.constant 0 : index
    %51 = vector.load %arg7[%c0_29, %c0_30, %c0_31, %c0_32] : memref<1x1x8x128xf32, #tpu.memory_space<vmem>>, vector<1x1x8x128xf32>
    %52 = vector.shape_cast %51 : vector<1x1x8x128xf32> to vector<8x128xf32>
    %53 = vector.shape_cast %50 : vector<8x128xf32> to vector<1x1x8x128xf32>
    tpu.vector_store %arg7[%c0_29, %c0_30, %c0_31, %c0_32], %53 {strides = array<i32>} : memref<1x1x8x128xf32, #tpu.memory_space<vmem>>, vector<1x1x8x128xf32>,
    return
  }
  func.func @transform_0(%arg0: i32, %arg1: i32, %arg2: i32, %arg3: i32) -> (i32, i32, i32) {
    %c1_i32 = arith.constant 1 : i32
    %0 = arith.muli %arg1, %c1_i32 : i32
    %1 = arith.addi %0, %arg2 : i32
    %c0_i32 = arith.constant 0 : i32
    return %arg0, %1, %arg3 : i32, i32, i32
  }
  func.func @transform_1(%arg0: i32, %arg1: i32, %arg2: i32, %arg3: i32) -> (i32, i32, i32) {
    %c1_i32 = arith.constant 1 : i32
    %0 = arith.muli %arg1, %c1_i32 : i32
    %1 = arith.addi %0, %arg2 : i32
    %c0_i32 = arith.constant 0 : i32
    return %arg0, %1, %arg3 : i32, i32, i32
  }
  func.func @transform_2(%arg0: i32, %arg1: i32, %arg2: i32, %arg3: i32) -> (i32, i32, i32) {
    %c1_i32 = arith.constant 1 : i32
    %0 = arith.muli %arg1, %c1_i32 : i32
    %1 = arith.addi %0, %arg2 : i32
    %c0_i32 = arith.constant 0 : i32
    return %arg0, %1, %arg3 : i32, i32, i32
  }
  func.func @transform_3(%arg0: i32, %arg1: i32, %arg2: i32, %arg3: i32) -> (i32, i32, i32, i32) {
    %c0_i32 = arith.constant 0 : i32
    %c0_i32_0 = arith.constant 0 : i32
    %c0_i32_1 = arith.constant 0 : i32
    return %arg0, %arg1, %c0_i32, %c0_i32_0 : i32, i32, i32, i32
  }
}

</mosaic_0001>

<llo_original>
// kernel: tpu_custom_call.1
$region0: #{tpu_custom_call.1}
  #allocation0 [shape = 'u32[]', space=smem, size = 0x4, offset = 0x4, fixed_abs, tag = 'smem constant byte address 0x4 - core index']
  #allocation1 [shape = 'u32[72,128]{1,0:T(1,128)}', space=vmem, size = 0x9000, scoped, tag = 'internal scratch']
  %s0 = inlined_call_operand.hbm [shape: f32[2,8,256], index: 0, kind: input, shape index: {}]
  %s1 = inlined_call_operand.hbm [shape: f32[2,8,256], index: 1, kind: input, shape index: {}]
  %s2 = inlined_call_operand.hbm [shape: f32[2,8,256], index: 2, kind: input, shape index: {}]
  %s3 = inlined_call_operand.hbm [shape: f32[2,1,8,128], index: 3, kind: output, shape index: {}]
  %s4 = sld [smem:[#allocation0]]
  $region61: #{tpu_custom_call.1} parent=0
    _
  %s6 = ssub.s32 1, %s4
  %s7 = scalar_select 0, %s6, %s4
  $region1: #{tpu_custom_call.1} parent=0
    #allocation2 [shape = 'u8[16384]{0}', space=vmem, size = 0x4000, scoped, tag = 'input window, operand 0']
    #allocation3 [shape = 's32[2]{0}', space=sflag, size = 0x8, scoped, tag = 'scoped memory for tpu_custom_call.1']
    #allocation4 [shape = 's32[2]{0}', space=sflag, size = 0x8, scoped, tag = 'scoped memory for tpu_custom_call.1']
    #allocation5 [shape = 'u8[16384]{0}', space=vmem, size = 0x4000, scoped, tag = 'input window, operand 1']
    #allocation6 [shape = 's32[2]{0}', space=sflag, size = 0x8, scoped, tag = 'scoped memory for tpu_custom_call.1']
    #allocation7 [shape = 'u8[16384]{0}', space=vmem, size = 0x4000, scoped, tag = 'input window, operand 2']
    #allocation8 [shape = 'u8[8192]{0}', space=vmem, size = 0x2000, scoped, tag = 'output window, operand 0']
    %8 = vsyncpa [#allocation3], 0
    %s9 = scalar_lea.sflag [#allocation3], 1
    %10 = vsyncpa %s9, 0
    %11 = vsyncpa [#allocation6], 0
    %s12 = scalar_lea.sflag [#allocation6], 1
    %13 = vsyncpa %s12, 0
    %14 = vsyncpa [#allocation4], 0
    %s15 = scalar_lea.sflag [#allocation4], 1
    %16 = vsyncpa %s15, 0
    loop: start=0, step=1, limit=4
    $region2: #{tpu_custom_call.1} parent=1 // loop_pre_header
      _
    $region3: #{tpu_custom_call.1} parent=1 // loop_header
      %s18 = sphi 0, %s22
      %p19 = scmp.ge.s32.totalorder %s18, 4
      %s25 = sphi 0, %s51
      %s26 = sphi 0, %s47
      %s27 = sphi 0, %s43
      %s28 = sphi 0, %s39
      %s29 = sphi 0, %s25
      %s30 = sphi 0, %s26
      %s31 = sphi 0, %s27
      %s32 = sphi 0, %s28
      %s33 = sphi 0, %s29
      %s34 = sphi 0, %s30
      %s35 = sphi 0, %s31
      %s36 = sphi 0, %s32
      %s60 = sphi 0, %s62
      %s63 = sphi 0, %s60
      %s64 = sphi 0, %s63
      %s80 = sphi 0, %s64
      %s92 = sphi 0, %s94
      %s95 = sphi 0, %s92
      %s96 = sphi 0, %s95
      %s112 = sphi 0, %s96
      %s124 = sphi 0, %s126
      %s127 = sphi 0, %s124
      %s128 = sphi 0, %s127
      %s144 = sphi 0, %s128
      %s152 = sphi 0, %s154
      %s155 = sphi 0, %s152
      %s156 = sphi 0, %s155
      %s172 = sphi 0, %s156
    $region4: #{tpu_custom_call.1} parent=1 // loop_header_branch
      %21 = sbr.rel (%p19) target = $region8
    $region5: #{tpu_custom_call.1} parent=1 // loop_body
      %s23 = ssub.s32 %s18, 1
      %s24 = ssub.s32 %s18, 2
      %s37 = sadd.s32 1, %s28
      %p38 = scmp.ge.s32.totalorder %s37, 1
      %s39 = scalar_select %p38, 0, %s37
      %s40 = sadd.s32 1, %s27
      %s41 = scalar_select %p38, %s40, %s27
      %p42 = scmp.ge.s32.totalorder %s41, 1
      %s43 = scalar_select %p42, 0, %s41
      %s44 = sadd.s32 1, %s26
      %s45 = scalar_select %p42, %s44, %s26
      %p46 = scmp.ge.s32.totalorder %s45, 1
      %s47 = scalar_select %p46, 0, %s45
      %s48 = sadd.s32 1, %s25
      %s49 = scalar_select %p46, %s48, %s25
      %p50 = scmp.ge.s32.totalorder %s49, 2
      %s51 = scalar_select %p50, 0, %s49
      %s52 = sadd.s32 %s26, %s27
      %s53 = sadd.s32 %s47, %s43
      %s54 = ssub.s32 %s25, %s51
      %s55 = ssub.s32 %s52, %s53
      %s56 = sor.u32 %s54, %s55
      %s57 = ssub.s32 %s28, %s39
      %s58 = sor.u32 %s56, %s57
      %p59 = scmp.eq.s32.totalorder %s58, 0
      %s61 = sadd.s32 %s60, 1
      %s62 = scalar_select %p59, %s60, %s61
      %p65 = pneg %p59
      %p66 = scmp.eq.s32.totalorder %s18, 1
      %p67 = por %p65, %p66
      %p68 = scmp.ne.s32.totalorder %s60, %s63
      %p69 = scmp.eq.s32.totalorder %s18, 0
      %p70 = por %p68, %p69
      %p71 = scmp.ne.s32.totalorder %s60, %s63
      %p72 = scmp.eq.s32.totalorder %s23, 1
      %p73 = por %p71, %p72
      %p74 = scmp.ne.s32.totalorder %s63, %s64
      %p75 = scmp.eq.s32.totalorder %s23, 0
      %p76 = por %p74, %p75
      %p77 = scmp.ne.s32.totalorder %s63, %s64
      %p78 = scmp.eq.s32.totalorder %s24, 1
      %p79 = por %p77, %p78
      %p81 = scmp.ne.s32.totalorder %s64, %s80
      %p82 = scmp.eq.s32.totalorder %s24, 0
      %p83 = por %p81, %p82
      %s84 = sadd.s32 %s26, %s27
      %s85 = sadd.s32 %s47, %s43
      %s86 = ssub.s32 %s25, %s51
      %s87 = ssub.s32 %s84, %s85
      %s88 = sor.u32 %s86, %s87
      %s89 = ssub.s32 %s28, %s39
      %s90 = sor.u32 %s88, %s89
      %p91 = scmp.eq.s32.totalorder %s90, 0
      %s93 = sadd.s32 %s92, 1
      %s94 = scalar_select %p91, %s92, %s93
      %p97 = pneg %p91
      %p98 = scmp.eq.s32.totalorder %s18, 1
      %p99 = por %p97, %p98
      %p100 = scmp.ne.s32.totalorder %s92, %s95
      %p101 = scmp.eq.s32.totalorder %s18, 0
      %p102 = por %p100, %p101
      %p103 = scmp.ne.s32.totalorder %s92, %s95
      %p104 = scmp.eq.s32.totalorder %s23, 1
      %p105 = por %p103, %p104
      %p106 = scmp.ne.s32.totalorder %s95, %s96
      %p107 = scmp.eq.s32.totalorder %s23, 0
      %p108 = por %p106, %p107
      %p109 = scmp.ne.s32.totalorder %s95, %s96
      %p110 = scmp.eq.s32.totalorder %s24, 1
      %p111 = por %p109, %p110
      %p113 = scmp.ne.s32.totalorder %s96, %s112
      %p114 = scmp.eq.s32.totalorder %s24, 0
      %p115 = por %p113, %p114
      %s116 = sadd.s32 %s26, %s27
      %s117 = sadd.s32 %s47, %s43
      %s118 = ssub.s32 %s25, %s51
      %s119 = ssub.s32 %s116, %s117
      %s120 = sor.u32 %s118, %s119
      %s121 = ssub.s32 %s28, %s39
      %s122 = sor.u32 %s120, %s121
      %p123 = scmp.eq.s32.totalorder %s122, 0
      %s125 = sadd.s32 %s124, 1
      %s126 = scalar_select %p123, %s124, %s125
      %p129 = pneg %p123
      %p130 = scmp.eq.s32.totalorder %s18, 1
      %p131 = por %p129, %p130
      %p132 = scmp.ne.s32.totalorder %s124, %s127
      %p133 = scmp.eq.s32.totalorder %s18, 0
      %p134 = por %p132, %p133
      %p135 = scmp.ne.s32.totalorder %s124, %s127
      %p136 = scmp.eq.s32.totalorder %s23, 1
      %p137 = por %p135, %p136
      %p138 = scmp.ne.s32.totalorder %s127, %s128
      %p139 = scmp.eq.s32.totalorder %s23, 0
      %p140 = por %p138, %p139
      %p141 = scmp.ne.s32.totalorder %s127, %s128
      %p142 = scmp.eq.s32.totalorder %s24, 1
      %p143 = por %p141, %p142
      %p145 = scmp.ne.s32.totalorder %s128, %s144
      %p146 = scmp.eq.s32.totalorder %s24, 0
      %p147 = por %p145, %p146
      %s148 = ssub.s32 %s25, %s51
      %s149 = ssub.s32 %s26, %s47
      %s150 = sor.u32 %s148, %s149
      %p151 = scmp.eq.s32.totalorder %s150, 0
      %s153 = sadd.s32 %s152, 1
      %s154 = scalar_select %p151, %s152, %s153
      %p157 = pneg %p151
      %p158 = scmp.eq.s32.totalorder %s18, 1
      %p159 = por %p157, %p158
      %p160 = scmp.ne.s32.totalorder %s152, %s155
      %p161 = scmp.eq.s32.totalorder %s18, 0
      %p162 = por %p160, %p161
      %p163 = scmp.ne.s32.totalorder %s152, %s155
      %p164 = scmp.eq.s32.totalorder %s23, 1
      %p165 = por %p163, %p164
      %p166 = scmp.ne.s32.totalorder %s155, %s156
      %p167 = scmp.eq.s32.totalorder %s23, 0
      %p168 = por %p166, %p167
      %p169 = scmp.ne.s32.totalorder %s155, %s156
      %p170 = scmp.eq.s32.totalorder %s24, 1
      %p171 = por %p169, %p170
      %p173 = scmp.ne.s32.totalorder %s156, %s172
      %p174 = scmp.eq.s32.totalorder %s24, 0
      %p175 = por %p173, %p174
      %p176 = scmp.le.s32.totalorder 1, %s18
      %p177 = scmp.lt.s32.totalorder %s18, 3
      %p178 = pnand %p176, %p177
      %p179 = pneg %p178
      // Predicated region
      $region9: #{tpu_custom_call.1} parent=5 // pred_check
        _
      $region10: #{tpu_custom_call.1} parent=5 // pred_check_branch
        %181 = sbr.rel (%p178) target = $region12
      $region11: #{tpu_custom_call.1} parent=5 // pred_region
        %s182 = ssub.s32 %s18, 1
      $region12: #{tpu_custom_call.1} parent=5 // pred_fallthru
        _
      %p183 = scmp.lt.s32.totalorder %s18, 2
      // Predicated region
      $region13: #{tpu_custom_call.1} parent=5 // pred_check
        %p184 = pneg %p183
      $region14: #{tpu_custom_call.1} parent=5 // pred_check_branch
        %186 = sbr.rel (%p184) target = $region16
      $region15: #{tpu_custom_call.1} parent=5 // pred_region
        // Predicated region
        $region17: #{tpu_custom_call.1} parent=15 // pred_check
          %p187 = pneg %p70
        $region18: #{tpu_custom_call.1} parent=15 // pred_check_branch
          %189 = sbr.rel (%p187) target = $region20
        $region19: #{tpu_custom_call.1} parent=15 // pred_region
          %s190 = sand.u32 %s60, 1
          %s191 = scalar_lea.sflag [#allocation3], %s190
          %s192 = sand.u32 %s60, 1
          %s193 = smul.addr %s192, 16
          %s194 = scalar_lea.vmem [#allocation2], %s193
          %s195 = sadd.s32 %s26, %s27
          %s196 = smul.u32 2, %s28
          %198 = vsyncadd %s191, 0
          %s199 = smul.addr %s195, 2
          %s200 = sadd.s32 %s196, %s199
          %s201 = smul.addr %s25, 2
          %s202 = sadd.s32 %s200, %s201
          %s203 = smul.addr %s202, 8
          %s204 = scalar_lea.hbm %s0, %s203
          %s206 = sshll.u32 %s204, 4
          %s207 = int_to_ptr.hbm [resolvable:$true] %s206
          %s208 = sshll.u32 %s194, 4
          %s209 = int_to_ptr.vmem [resolvable:$true] %s208
          %211 = dma.hbm_to_vmem [thread:$0]  %s207, 256, %s209, %s191
        $region20: #{tpu_custom_call.1} parent=15 // pred_fallthru
          _
        // Predicated region
        $region21: #{tpu_custom_call.1} parent=15 // pred_check
          %p212 = pneg %p102
        $region22: #{tpu_custom_call.1} parent=15 // pred_check_branch
          %214 = sbr.rel (%p212) target = $region24
        $region23: #{tpu_custom_call.1} parent=15 // pred_region
          %s215 = sand.u32 %s18, 1
          %s216 = scalar_lea.sflag [#allocation6], %s215
          %s217 = sand.u32 %s92, 1
          %s218 = smul.addr %s217, 16
          %s219 = scalar_lea.vmem [#allocation5], %s218
          %s220 = sadd.s32 %s26, %s27
          %s221 = smul.u32 2, %s28
          %223 = vsyncadd %s216, 0
          %s224 = smul.addr %s220, 2
          %s225 = sadd.s32 %s221, %s224
          %s226 = smul.addr %s25, 2
          %s227 = sadd.s32 %s225, %s226
          %s228 = smul.addr %s227, 8
          %s229 = scalar_lea.hbm %s1, %s228
          %s231 = sshll.u32 %s229, 4
          %s232 = int_to_ptr.hbm [resolvable:$true] %s231
          %s233 = sshll.u32 %s219, 4
          %s234 = int_to_ptr.vmem [resolvable:$true] %s233
          %236 = dma.hbm_to_vmem [thread:$0]  %s232, 256, %s234, %s216
        $region24: #{tpu_custom_call.1} parent=15 // pred_fallthru
          _
        // Predicated region
        $region25: #{tpu_custom_call.1} parent=15 // pred_check
          %p237 = pneg %p134
        $region26: #{tpu_custom_call.1} parent=15 // pred_check_branch
          %239 = sbr.rel (%p237) target = $region28
        $region27: #{tpu_custom_call.1} parent=15 // pred_region
          %s240 = sand.u32 %s18, 1
          %s241 = scalar_lea.sflag [#allocation6], %s240
          %s242 = sand.u32 %s124, 1
          %s243 = smul.addr %s242, 16
          %s244 = scalar_lea.vmem [#allocation7], %s243
          %s245 = sadd.s32 %s26, %s27
          %s246 = smul.u32 2, %s28
          %248 = vsyncadd %s241, 0
          %s249 = smul.addr %s245, 2
          %s250 = sadd.s32 %s246, %s249
          %s251 = smul.addr %s25, 2
          %s252 = sadd.s32 %s250, %s251
          %s253 = smul.addr %s252, 8
          %s254 = scalar_lea.hbm %s2, %s253
          %s256 = sshll.u32 %s254, 4
          %s257 = int_to_ptr.hbm [resolvable:$true] %s256
          %s258 = sshll.u32 %s244, 4
          %s259 = int_to_ptr.vmem [resolvable:$true] %s258
          %261 = dma.hbm_to_vmem [thread:$0]  %s257, 256, %s259, %s241
        $region28: #{tpu_custom_call.1} parent=15 // pred_fallthru
          _
      $region16: #{tpu_custom_call.1} parent=5 // pred_fallthru
        _
      %p262 = scmp.le.s32.totalorder 1, %s18
      %p263 = scmp.lt.s32.totalorder %s18, 3
      %p264 = pnand %p262, %p263
      %p265 = pneg %p264
      // Predicated region
      $region29: #{tpu_custom_call.1} parent=5 // pred_check
        _
      $region30: #{tpu_custom_call.1} parent=5 // pred_check_branch
        %267 = sbr.rel (%p264) target = $region32
      $region31: #{tpu_custom_call.1} parent=5 // pred_region
        %s268 = ssub.s32 %s18, 1
        %s269 = sand.u32 %s63, 1
        %s270 = scalar_lea.sflag [#allocation3], %s269
        %s271 = sand.u32 %s63, 1
        %s272 = smul.addr %s271, 16
        %s273 = scalar_lea.vmem [#allocation2], %s272
        // Predicated region
        $region33: #{tpu_custom_call.1} parent=31 // pred_check
          %p274 = pneg %p76
        $region34: #{tpu_custom_call.1} parent=31 // pred_check_branch
          %276 = sbr.rel (%p274) target = $region36
        $region35: #{tpu_custom_call.1} parent=31 // pred_region
          %278 = dma.done %s270, 256
        $region36: #{tpu_custom_call.1} parent=31 // pred_fallthru
          _
        %s279 = sand.u32 %s23, 1
        %s280 = scalar_lea.sflag [#allocation6], %s279
        %s281 = sand.u32 %s95, 1
        %s282 = smul.addr %s281, 16
        %s283 = scalar_lea.vmem [#allocation5], %s282
        // Predicated region
        $region37: #{tpu_custom_call.1} parent=31 // pred_check
          %p284 = pneg %p108
        $region38: #{tpu_custom_call.1} parent=31 // pred_check_branch
          %286 = sbr.rel (%p284) target = $region40
        $region39: #{tpu_custom_call.1} parent=31 // pred_region
          %288 = dma.done %s280, 256
        $region40: #{tpu_custom_call.1} parent=31 // pred_fallthru
          _
        %s289 = sand.u32 %s23, 1
        %s290 = scalar_lea.sflag [#allocation6], %s289
        %s291 = sand.u32 %s127, 1
        %s292 = smul.addr %s291, 16
        %s293 = scalar_lea.vmem [#allocation7], %s292
        // Predicated region
        $region41: #{tpu_custom_call.1} parent=31 // pred_check
          %p294 = pneg %p140
        $region42: #{tpu_custom_call.1} parent=31 // pred_check_branch
          %296 = sbr.rel (%p294) target = $region44
        $region43: #{tpu_custom_call.1} parent=31 // pred_region
          %298 = dma.done %s290, 256
        $region44: #{tpu_custom_call.1} parent=31 // pred_fallthru
          _
        %s299 = sand.u32 %s63, 1
        %s300 = scalar_lea.sflag [#allocation3], %s299
        %s301 = sand.u32 %s63, 1
        %s302 = smul.addr %s301, 16
        %s303 = scalar_lea.vmem [#allocation2], %s302
        %p304 = pneg %p76
        %p305 = pneg %p73
        %s306 = sand.u32 %s23, 1
        %s307 = scalar_lea.sflag [#allocation6], %s306
        %s308 = sand.u32 %s95, 1
        %s309 = smul.addr %s308, 16
        %s310 = scalar_lea.vmem [#allocation5], %s309
        %p311 = pneg %p108
        %p312 = pneg %p105
        %s313 = sand.u32 %s23, 1
        %s314 = scalar_lea.sflag [#allocation6], %s313
        %s315 = sand.u32 %s127, 1
        %s316 = smul.addr %s315, 16
        %s317 = scalar_lea.vmem [#allocation7], %s316
        %p318 = pneg %p140
        %p319 = pneg %p137
        %p320 = pneg %p168
        %p321 = pneg %p165
        %s322 = sand.u32 %s155, 1
        %s323 = scalar_lea.sflag [#allocation4], %s322
        %s324 = sand.u32 %s155, 1
        %s325 = smul.addr %s324, 8
        %s326 = scalar_lea.vmem [#allocation8], %s325
        %s327 = sadd.s32 %s30, %s31
        %s328 = smul.u32 2, %s32
        %s329 = sadd.s32 %s30, %s31
        %s330 = smul.u32 2, %s32
        %s331 = sadd.s32 %s30, %s31
        %s332 = smul.u32 2, %s32
        %p333 = scmp.eq.s32.totalorder %s31, 0
        %p334 = scmp.eq.s32.totalorder %s32, 0
        %p335 = pnand %p333, %p334
        %p336 = pneg %p335
        // Predicated region
        $region45: #{tpu_custom_call.1} parent=31 // pred_check
          _
        $region46: #{tpu_custom_call.1} parent=31 // pred_check_branch
          %338 = sbr.rel (%p335) target = $region48
        $region47: #{tpu_custom_call.1} parent=31 // pred_region
          %339 = vst [vmem:[%s326] sm:$0xff] 0.0
        $region48: #{tpu_custom_call.1} parent=31 // pred_fallthru
          _
        %v340 = vld [vmem:[%s326] sm:$0xff]
        %v341 = vld [vmem:[%s273] sm:$0xff]
        %v342 = vld [vmem:[%s283] sm:$0xff]
        %v343 = vld [vmem:[%s293] sm:$0xff]
        %v344 = vmul.f32 %v342, 0.9
        %v345 = vadd.f32 %v344, 0.05
        %v346 = vmax.f32 %v341, 0.0
        %v347 = vmul.f32 %v341, %v345
        %v348 = vsub.f32 %v346, %v347
        %v349 = vand.u32 2147483647, %v341
        %v350 = vsub.f32 0.0, %v349
        %v351 = vmul.f32 %v350, 1.442695
        %v352 = vpow.pop %v351
        %v353 = vadd.f32 %v352, 1.0
        %v354 = vlog2.pop %v353
        %v355 = vmul.f32 %v354, 0.6931472
        %v356 = vmul.f32 -0.5, %v352
        %v357 = vadd.f32 %v356, 1.0
        %v358 = vmul.f32 %v357, %v352
        %v359 = vand.u32 2147483647, %v352
        %vm360 = vcmp.lt.f32.partialorder %v359, 0.0004427343
        %v361 = vsel %vm360, %v358, %v355
        %v362 = vadd.f32 %v348, %v361
        %v363 = vmul.f32 %v362, %v343
        %v364 = vadd.f32 %v340, %v363
        %v365 = vld [vmem:[%s273 + $0x8] sm:$0xff]
        %v366 = vld [vmem:[%s283 + $0x8] sm:$0xff]
        %v367 = vld [vmem:[%s293 + $0x8] sm:$0xff]
        %v368 = vmul.f32 %v366, 0.9
        %v369 = vadd.f32 %v368, 0.05
        %v370 = vmax.f32 %v365, 0.0
        %v371 = vmul.f32 %v365, %v369
        %v372 = vsub.f32 %v370, %v371
        %v373 = vand.u32 2147483647, %v365
        %v374 = vsub.f32 0.0, %v373
        %v375 = vmul.f32 %v374, 1.442695
        %v376 = vpow.pop %v375
        %v377 = vadd.f32 %v376, 1.0
        %v378 = vlog2.pop %v377
        %v379 = vmul.f32 %v378, 0.6931472
        %v380 = vmul.f32 -0.5, %v376
        %v381 = vadd.f32 %v380, 1.0
        %v382 = vmul.f32 %v381, %v376
        %v383 = vand.u32 2147483647, %v376
        %vm384 = vcmp.lt.f32.partialorder %v383, 0.0004427343
        %v385 = vsel %vm384, %v382, %v379
        %v386 = vadd.f32 %v372, %v385
        %v387 = vmul.f32 %v386, %v367
        %v388 = vadd.f32 %v364, %v387
        %389 = vst [vmem:[%s326] sm:$0xff] %v388
        %s390 = sand.u32 %s155, 1
        %s391 = scalar_lea.sflag [#allocation4], %s390
        %s392 = sand.u32 %s155, 1
        %s393 = smul.addr %s392, 8
        %s394 = scalar_lea.vmem [#allocation8], %s393
        // Predicated region
        $region49: #{tpu_custom_call.1} parent=31 // pred_check
          %p395 = pneg %p165
        $region50: #{tpu_custom_call.1} parent=31 // pred_check_branch
          %397 = sbr.rel (%p395) target = $region52
        $region51: #{tpu_custom_call.1} parent=31 // pred_region
          %399 = vsyncadd %s391, 0
          %s400 = sadd.s32 %s30, %s29
          %s401 = smul.addr %s400, 8
          %s402 = scalar_lea.hbm %s3, %s401
          %s404 = sshll.u32 %s394, 4
          %s405 = int_to_ptr.vmem [resolvable:$true] %s404
          %s406 = sshll.u32 %s402, 4
          %s407 = int_to_ptr.hbm [resolvable:$true] %s406
          %409 = dma.vmem_to_hbm [thread:$0]  %s405, 128, %s407, %s391
        $region52: #{tpu_custom_call.1} parent=31 // pred_fallthru
          _
      $region32: #{tpu_custom_call.1} parent=5 // pred_fallthru
        _
      %p410 = scmp.le.s32.totalorder 2, %s18
      // Predicated region
      $region53: #{tpu_custom_call.1} parent=5 // pred_check
        %p411 = pneg %p410
      $region54: #{tpu_custom_call.1} parent=5 // pred_check_branch
        %413 = sbr.rel (%p411) target = $region56
      $region55: #{tpu_custom_call.1} parent=5 // pred_region
        %s414 = ssub.s32 %s18, 2
        // Predicated region
        $region57: #{tpu_custom_call.1} parent=55 // pred_check
          %p415 = pneg %p171
        $region58: #{tpu_custom_call.1} parent=55 // pred_check_branch
          %417 = sbr.rel (%p415) target = $region60
        $region59: #{tpu_custom_call.1} parent=55 // pred_region
          %s418 = sand.u32 %s156, 1
          %s419 = scalar_lea.sflag [#allocation4], %s418
          %s420 = sand.u32 %s156, 1
          %s421 = smul.addr %s420, 8
          %s422 = scalar_lea.vmem [#allocation8], %s421
          %424 = dma.done %s419, 128
        $region60: #{tpu_custom_call.1} parent=55 // pred_fallthru
          _
      $region56: #{tpu_custom_call.1} parent=5 // pred_fallthru
        _
    $region6: #{tpu_custom_call.1} parent=1 // loop_footer
      %s22 = sadd.s32 1, %s18
    $region7: #{tpu_custom_call.1} parent=1 // loop_footer_branch
      %17 = sbr.rel target = $region3
    $region8: #{tpu_custom_call.1} parent=1 // loop_exit
      _
    %425 = vsyncpa [#allocation3], 1
    %s426 = scalar_lea.sflag [#allocation3], 1
    %427 = vsyncpa %s426, 1
    %428 = vsyncpa [#allocation6], 1
    %s429 = scalar_lea.sflag [#allocation6], 1
    %430 = vsyncpa %s429, 1
    %431 = vsyncpa [#allocation4], 1
    %s432 = scalar_lea.sflag [#allocation4], 1
    %433 = vsyncpa %s432, 1

</llo_original>
